<compile_context>
chip_gen: v6e
topology: v6e:2x2x1
jax: 0.10.0
libtpu: 0.0.40
codegen_flags: <defaults>
</compile_context>

<pallas_src>
import functools
import math

import jax
import jax.numpy as jnp
from jax import lax
from jax.experimental import pallas as pl
from jax.experimental.pallas import tpu as pltpu


_DEFAULT_BLOCK_BYTES = 4 * 1024 * 1024  # ~4 MiB per input block (x2 for double buffering)


# ------------------------------ tile selection -------------------------------
def _choose_tb_3d(B, H, W, itemsize, block_bytes):
    """How many batch images to fold into one block (rows per block = tb * H)."""
    per_item = H * W * itemsize
    tb = max(1, min(B, block_bytes // max(1, per_item)))
    if tb >= B:
        return B
    # Keep (tb * H) a multiple of 8 sublanes so the row-block tiles cleanly.
    m = 8 // math.gcd(H, 8)
    tb = max(m, (tb // m) * m)
    return B if tb >= B else tb


def _choose_tb_2d(B, W, itemsize, block_bytes):
    per_row = W * itemsize
    tb = max(1, min(B, block_bytes // max(1, per_row)))
    if tb >= B:
        return B
    tb = max(8, (tb // 8) * 8)
    return B if tb >= B else tb


def _vmem_limit(block_in_bytes):
    return int(min(100 * 1024 * 1024, max(32 * 1024 * 1024, 3 * block_in_bytes)))


# ----------------------------- 3D (ndims > 2) -------------------------------
def _tv3d_kernel(x_ref, o_ref, *, H, W, total_rows, inv_count_h, inv_count_w, use_roll):
    i = pl.program_id(0)
    x = x_ref[...].astype(jnp.float32)  # (R, W): rows of TB stacked images
    R = x.shape[0]

    if use_roll:
        # Forward differences via XLU rotates (shift = size-1 == roll by -1).
        # Wrap positions and cross-image / out-of-range rows are masked below.
        dh = pltpu.roll(x, R - 1, 0) - x          # x[r+1, c] - x[r, c]
        dw = pltpu.roll(x, W - 1, 1) - x          # x[r, c+1] - x[r, c]
        rows = lax.broadcasted_iota(jnp.int32, (R, W), 0) + i * R
        cols = lax.broadcasted_iota(jnp.int32, (R, W), 1)
        in_bounds = rows < total_rows             # ragged last batch-block
        dh = jnp.where(in_bounds & (rows % H != H - 1), dh, 0.0)
        dw = jnp.where(in_bounds & (cols != W - 1), dw, 0.0)
    else:
        # Fallback for lane/sublane-unaligned shapes: shifted-slice differences.
        dh = x[1:, :] - x[:-1, :]                 # (R-1, W)
        dw = x[:, 1:] - x[:, :-1]                 # (R, W-1)
        rows_h = lax.broadcasted_iota(jnp.int32, (R - 1, W), 0) + i * R
        rows_w = lax.broadcasted_iota(jnp.int32, (R, W - 1), 0) + i * R
        dh = jnp.where((rows_h < total_rows) & (rows_h % H != H - 1), dh, 0.0)
        dw = jnp.where(rows_w < total_rows, dw, 0.0)

    # |d|^2 == d^2 (abs dropped); global counts folded in as constant reciprocals.
    partial = jnp.sum(dh * dh) * inv_count_h + jnp.sum(dw * dw) * inv_count_w
    o_ref[...] = jnp.broadcast_to(partial, o_ref.shape)


def tv_3d(x, tv_weight=1.0, block_bytes=_DEFAULT_BLOCK_BYTES):
    B, H, W = x.shape
    itemsize = x.dtype.itemsize
    count_h = B * (H - 1) * W   # _tensor_size(x[:, 1:, :])
    count_w = B * H * (W - 1)   # _tensor_size(x[:, :, 1:])

    tb = _choose_tb_3d(B, H, W, itemsize, block_bytes)
    R = tb * H                  # rows per block of the (B*H, W) view
    total_rows = B * H
    nb = (B + tb - 1) // tb
    use_roll = (W % 128 == 0) and (R % 8 == 0)

    kernel = functools.partial(
        _tv3d_kernel,
        H=H, W=W, total_rows=total_rows,
        # guards only the degenerate H==1 / W==1 case (no TV terms)
        inv_count_h=(1.0 / count_h) if count_h else 0.0,
        inv_count_w=(1.0 / count_w) if count_w else 0.0,
        use_roll=use_roll,
    )

    x_rows = x.reshape(total_rows, W)   # free (row-major) view as a row slab

    partials = pl.pallas_call(
        kernel,
        out_shape=jax.ShapeDtypeStruct((nb, 8, 128), jnp.float32),
        grid_spec=pltpu.PrefetchScalarGridSpec(
            num_scalar_prefetch=0,
            grid=(nb,),
            in_specs=[pl.BlockSpec((R, W), lambda i: (i, 0))],
            out_specs=pl.BlockSpec((1, 8, 128), lambda i: (i, 0, 0)),
        ),
        compiler_params=pltpu.CompilerParams(
            dimension_semantics=("parallel",),
            vmem_limit_bytes=_vmem_limit(R * W * itemsize),
        ),
        cost_estimate=pl.CostEstimate(
            flops=6 * B * H * W,
            transcendentals=0,
            bytes_accessed=B * H * W * itemsize + nb * 8 * 128 * 4,
        ),
    )(x_rows)

    # Tiny finalize outside the kernel (num_blocks elements).
    total = jnp.sum(partials[:, 0, 0])
    return tv_weight * jnp.sqrt(total)


# ----------------------------- 2D (ndims == 2) -------------------------------
def _tv2d_kernel(x_ref, o_ref, *, B, W, inv_count_w, use_roll):
    i = pl.program_id(0)
    x = x_ref[...].astype(jnp.float32)  # (TB, W)
    TB = x.shape[0]

    if use_roll:
        dw = pltpu.roll(x, W - 1, 1) - x          # x[r, c+1] - x[r, c]
        rows = lax.broadcasted_iota(jnp.int32, (TB, W), 0) + i * TB
        cols = lax.broadcasted_iota(jnp.int32, (TB, W), 1)
        dw = jnp.where((rows < B) & (cols != W - 1), jnp.abs(dw), 0.0)
    else:
        dw = x[:, 1:] - x[:, :-1]                 # (TB, W-1)
        rows = lax.broadcasted_iota(jnp.int32, (TB, W - 1), 0) + i * TB
        dw = jnp.where(rows < B, jnp.abs(dw), 0.0)

    o_ref[...] = jnp.broadcast_to(jnp.sum(dw) * inv_count_w, o_ref.shape)


def tv_2d(x, tv_weight=1.0, block_bytes=_DEFAULT_BLOCK_BYTES):
    B, W = x.shape
    itemsize = x.dtype.itemsize
    count_w = B * (W - 1)       # _tensor_size(x[:, 1:])

    tb = _choose_tb_2d(B, W, itemsize, block_bytes)
    nb = (B + tb - 1) // tb
    use_roll = (W % 128 == 0) and (tb % 8 == 0)

    kernel = functools.partial(
        _tv2d_kernel,
        B=B, W=W,
        inv_count_w=(1.0 / count_w) if count_w else 0.0,
        use_roll=use_roll,
    )

    partials = pl.pallas_call(
        kernel,
        out_shape=jax.ShapeDtypeStruct((nb, 8, 128), jnp.float32),
        grid_spec=pltpu.PrefetchScalarGridSpec(
            num_scalar_prefetch=0,
            grid=(nb,),
            in_specs=[pl.BlockSpec((tb, W), lambda i: (i, 0))],
            out_specs=pl.BlockSpec((1, 8, 128), lambda i: (i, 0, 0)),
        ),
        compiler_params=pltpu.CompilerParams(
            dimension_semantics=("parallel",),
            vmem_limit_bytes=_vmem_limit(tb * W * itemsize),
        ),
        cost_estimate=pl.CostEstimate(
            flops=3 * B * W,
            transcendentals=0,
            bytes_accessed=B * W * itemsize + nb * 8 * 128 * 4,
        ),
    )(x)

    total = jnp.sum(partials[:, 0, 0])
    return tv_weight * total


# ------------------------------- Module wrapper ------------------------------
class TotalVariation:
    """JAX/Pallas port of the PyTorch TotalVariation module."""

    def __init__(self, TV_weight=1.0, ndim=2, block_bytes=_DEFAULT_BLOCK_BYTES):
        self.TV_weight = TV_weight
        self.ndims = ndim
        self.block_bytes = block_bytes

    def __call__(self, x):
        if self.ndims > 2:
            return tv_3d(x, self.TV_weight, self.block_bytes)
        return tv_2d(x, self.TV_weight, self.block_bytes)


# --------------------------------- reference ---------------------------------
def _ref_3d(x, tv_weight):
    x = x.astype(jnp.float32)
    B, H, W = x.shape
    count_h = B * (H - 1) * W
    count_w = B * H * (W - 1)
    h_tv = jnp.sum(jnp.square(x[:, 1:, :] - x[:, :-1, :]))
    w_tv = jnp.sum(jnp.square(x[:, :, 1:] - x[:, :, :-1]))
    return tv_weight * jnp.sqrt(h_tv / count_h + w_tv / count_w)


def _ref_2d(x, tv_weight):
    x = x.astype(jnp.float32)
    B, W = x.shape
    count_w = B * (W - 1)
    return tv_weight * jnp.sum(jnp.abs(x[:, 1:] - x[:, :-1])) / count_w


if __name__ == "__main__":
    key = jax.random.PRNGKey(0)
    k3a, k3b, k2 = jax.random.split(key, 3)

    # ndims > 2, lane-aligned (roll fast path), forced multi-block grid with a
    # ragged last block: B=10 images, blocks of 8 images each.
    x3a = jax.random.normal(k3a, (10, 16, 128), dtype=jnp.float32)
    tv3_blocked = TotalVariation(TV_weight=1.5, ndim=3, block_bytes=64 * 1024)
    out3a = jax.block_until_ready(tv3_blocked(x3a))
    ref3a = _ref_3d(x3a, 1.5)
    assert jnp.allclose(out3a, ref3a, rtol=1e-5, atol=1e-5), (out3a, ref3a)

    # ndims > 2, small unaligned image (slice fallback path), single block.
    x3b = jax.random.normal(k3b, (2, 16, 16), dtype=jnp.float32)
    tv3 = TotalVariation(TV_weight=1.5, ndim=3)
    out3b = jax.block_until_ready(tv3(x3b))
    ref3b = _ref_3d(x3b, 1.5)
    assert jnp.allclose(out3b, ref3b, rtol=1e-5, atol=1e-5), (out3b, ref3b)

    # ndims == 2 branch (default): x is [B, W].
    x2 = jax.random.normal(k2, (4, 32), dtype=jnp.float32)
    tv2 = TotalVariation(TV_weight=1.0, ndim=2)
    out2 = jax.block_until_ready(tv2(x2))
    ref2 = _ref_2d(x2, 1.0)
    assert jnp.allclose(out2, ref2, rtol=1e-5, atol=1e-5), (out2, ref2)

    print("KERNEL_OK")
</pallas_src>

<mosaic_0001>
module attributes {stable_mosaic.version = 11 : i64} {
  func.func @_tv3d_kernel(%arg0: i32, %arg1: memref<128x128xf32, #tpu.memory_space<vmem>>, %arg2: memref<1x8x128xf32, #tpu.memory_space<vmem>>) attributes {dimension_semantics = [#tpu.dimension_semantics<parallel>], iteration_bounds = array<i64: 2>, scalar_prefetch = 0 : i64, scratch_operands = 0 : i64, tpu.core_type = #tpu.core_type<tc>, window_params = [{transform_indices = @transform_0, window_bounds = array<i64: 128, 128>}, {transform_indices = @transform_1, window_bounds = array<i64: 1, 8, 128>}]} {
    %c0 = arith.constant 0 : index
    %c0_0 = arith.constant 0 : index
    %0 = vector.load %arg1[%c0, %c0_0] : memref<128x128xf32, #tpu.memory_space<vmem>>, vector<128x128xf32>
    %c127_i32 = arith.constant 127 : i32
    %1 = tpu.dynamic_rotate %0 by %c127_i32 dim 0 : vector<128x128xf32>, i32 -> vector<128x128xf32>
    %2 = arith.subf %1, %0 : vector<128x128xf32>
    %c127_i32_1 = arith.constant 127 : i32
    %3 = tpu.dynamic_rotate %0 by %c127_i32_1 dim 1 : vector<128x128xf32>, i32 -> vector<128x128xf32>
    %4 = arith.subf %3, %0 : vector<128x128xf32>
    %5 = tpu.iota {dimensions = array<i32: 0>} : vector<128x128xi32>
    %c128_i32 = arith.constant 128 : i32
    %6 = arith.muli %arg0, %c128_i32 : i32
    %7 = vector.broadcast %6 : i32 to vector<128x128xi32>
    %8 = arith.addi %5, %7 : vector<128x128xi32>
    %9 = tpu.iota {dimensions = array<i32: 1>} : vector<128x128xi32>
    %c160_i32 = arith.constant 160 : i32
    %10 = vector.broadcast %c160_i32 : i32 to vector<128x128xi32>
    %11 = arith.cmpi slt, %8, %10 : vector<128x128xi32>
    %c16_i32 = arith.constant 16 : i32
    %c0_i32 = arith.constant 0 : i32
    %12 = arith.cmpi eq, %c16_i32, %c0_i32 : i32
    %c1_i32 = arith.constant 1 : i32
    %13 = arith.select %12, %c1_i32, %c16_i32 : i32
    %14 = vector.broadcast %13 : i32 to vector<128x128xi32>
    %15 = arith.remsi %8, %14 : vector<128x128xi32>
    %c0_i32_2 = arith.constant 0 : i32
    %16 = vector.broadcast %c0_i32_2 : i32 to vector<128x128xi32>
    %17 = arith.cmpi ne, %15, %16 : vector<128x128xi32>
    %c0_i32_3 = arith.constant 0 : i32
    %18 = vector.broadcast %c0_i32_3 : i32 to vector<128x128xi32>
    %19 = arith.cmpi slt, %15, %18 : vector<128x128xi32>
    %c0_i32_4 = arith.constant 0 : i32
    %20 = arith.cmpi slt, %13, %c0_i32_4 : i32
    %21 = vector.broadcast %20 : i1 to vector<128x128xi1>
    %22 = vector.broadcast %21 : vector<128x128xi1> to vector<128x128xi1>
    %23 = arith.xori %19, %22 : vector<128x128xi1>
    %24 = arith.andi %23, %17 : vector<128x128xi1>
    %25 = vector.broadcast %13 : i32 to vector<128x128xi32>
    %26 = arith.addi %15, %25 : vector<128x128xi32>
    %27 = arith.select %24, %26, %15 : vector<128x128xi1>, vector<128x128xi32>
    %c15_i32 = arith.constant 15 : i32
    %28 = vector.broadcast %c15_i32 : i32 to vector<128x128xi32>
    %29 = arith.cmpi ne, %27, %28 : vector<128x128xi32>
    %30 = arith.andi %11, %29 : vector<128x128xi1>
    %cst = arith.constant 0.000000e+00 : f32
    %31 = vector.broadcast %cst : f32 to vector<128x128xf32>
    %32 = arith.select %30, %2, %31 : vector<128x128xi1>, vector<128x128xf32>
    %c127_i32_5 = arith.constant 127 : i32
    %33 = vector.broadcast %c127_i32_5 : i32 to vector<128x128xi32>
    %34 = arith.cmpi ne, %9, %33 : vector<128x128xi32>
    %35 = arith.andi %11, %34 : vector<128x128xi1>
    %cst_6 = arith.constant 0.000000e+00 : f32
    %36 = vector.broadcast %cst_6 : f32 to vector<128x128xf32>
    %37 = arith.select %35, %4, %36 : vector<128x128xi1>, vector<128x128xf32>
    %38 = arith.mulf %32, %32 : vector<128x128xf32>
    %39 = vector.shape_cast %38 : vector<128x128xf32> to vector<1x128x128xf32>
    %cst_7 = arith.constant dense<0.000000e+00> : vector<1xf32>
    %40 = vector.multi_reduction <add>, %39, %cst_7 [1, 2] : vector<1x128x128xf32> to vector<1xf32>
    %41 = vector.shape_cast %40 : vector<1xf32> to vector<1x1x1xf32>
    %42 = vector.extract %41[0, 0, 0] : f32 from vector<1x1x1xf32>
    %cst_8 = arith.constant 5.20833346E-5 : f32
    %43 = arith.mulf %42, %cst_8 : f32
    %44 = arith.mulf %37, %37 : vector<128x128xf32>
    %45 = vector.shape_cast %44 : vector<128x128xf32> to vector<1x128x128xf32>
    %cst_9 = arith.constant dense<0.000000e+00> : vector<1xf32>
    %46 = vector.multi_reduction <add>, %45, %cst_9 [1, 2] : vector<1x128x128xf32> to vector<1xf32>
    %47 = vector.shape_cast %46 : vector<1xf32> to vector<1x1x1xf32>
    %48 = vector.extract %47[0, 0, 0] : f32 from vector<1x1x1xf32>
    %cst_10 = arith.constant 4.921260e-05 : f32
    %49 = arith.mulf %48, %cst_10 : f32
    %50 = arith.addf %43, %49 : f32
    %51 = vector.broadcast %50 : f32 to vector<1x8x128xf32>
    %c0_11 = arith.constant 0 : index
    %c0_12 = arith.constant 0 : index
    %c0_13 = arith.constant 0 : index
    %52 = vector.load %arg2[%c0_11, %c0_12, %c0_13] : memref<1x8x128xf32, #tpu.memory_space<vmem>>, vector<1x8x128xf32>
    tpu.vector_store %arg2[%c0_11, %c0_12, %c0_13], %51 {strides = array<i32>} : memref<1x8x128xf32, #tpu.memory_space<vmem>>, vector<1x8x128xf32>,
    return
  }
  func.func @transform_0(%arg0: i32) -> (i32, i32) {
    %c0_i32 = arith.constant 0 : i32
    %c0_i32_0 = arith.constant 0 : i32
    return %arg0, %c0_i32 : i32, i32
  }
  func.func @transform_1(%arg0: i32) -> (i32, i32, i32) {
    %c0_i32 = arith.constant 0 : i32
    %c0_i32_0 = arith.constant 0 : i32
    %c0_i32_1 = arith.constant 0 : i32
    return %arg0, %c0_i32, %c0_i32_0 : i32, i32, i32
  }
}

</mosaic_0001>

<llo_original>
// kernel: tpu_custom_call.1
$region0: #{tpu_custom_call.1}
  #allocation0 [shape = 'u32[]', space=smem, size = 0x4, offset = 0x4, fixed_abs, tag = 'smem constant byte address 0x4 - core index']
  #allocation1 [shape = 'u32[144,128]{1,0:T(1,128)}', space=vmem, size = 0x12000, scoped, tag = 'internal scratch']
  %s0 = inlined_call_operand.hbm [shape: f32[160,128], index: 0, kind: input, shape index: {}]
  %s1 = inlined_call_operand.hbm [shape: f32[2,8,128], index: 1, kind: output, shape index: {}]
  %s2 = sld [smem:[#allocation0]]
  $region41: #{tpu_custom_call.1} parent=0
    _
  %s4 = ssub.s32 1, %s2
  %s5 = scalar_select 0, %s4, %s2
  $region1: #{tpu_custom_call.1} parent=0
    #allocation2 [shape = 'u8[131072]{0}', space=vmem, size = 0x20000, scoped, tag = 'input window, operand 0']
    #allocation3 [shape = 's32[2]{0}', space=sflag, size = 0x8, scoped, tag = 'scoped memory for tpu_custom_call.1']
    #allocation4 [shape = 's32[2]{0}', space=sflag, size = 0x8, scoped, tag = 'scoped memory for tpu_custom_call.1']
    #allocation5 [shape = 'u8[8192]{0}', space=vmem, size = 0x2000, scoped, tag = 'output window, operand 0']
    %6 = vsyncpa [#allocation3], 0
    %s7 = scalar_lea.sflag [#allocation3], 1
    %8 = vsyncpa %s7, 0
    %9 = vsyncpa [#allocation4], 0
    %s10 = scalar_lea.sflag [#allocation4], 1
    %11 = vsyncpa %s10, 0
    loop: start=0, step=1, limit=4
    $region2: #{tpu_custom_call.1} parent=1 // loop_pre_header
      _
    $region3: #{tpu_custom_call.1} parent=1 // loop_header
      %s13 = sphi 0, %s17
      %p14 = scmp.ge.s32.totalorder %s13, 4
      %s23 = sphi 0, %s25
      %s26 = sphi 0, %s23
      %s27 = sphi 0, %s26
      %s43 = sphi 0, %s27
      %s49 = sphi 0, %s51
      %s52 = sphi 0, %s49
      %s53 = sphi 0, %s52
      %s69 = sphi 0, %s53
    $region4: #{tpu_custom_call.1} parent=1 // loop_header_branch
      %16 = sbr.rel (%p14) target = $region8
    $region5: #{tpu_custom_call.1} parent=1 // loop_body
      %s18 = ssub.s32 %s13, 1
      %s19 = ssub.s32 %s13, 2
      %s20 = sadd.s32 %s13, 1
      %s21 = ssub.s32 %s13, %s20
      %p22 = scmp.eq.s32.totalorder %s21, 0
      %s24 = sadd.s32 %s23, 1
      %s25 = scalar_select %p22, %s23, %s24
      %p28 = pneg %p22
      %p29 = scmp.eq.s32.totalorder %s13, 1
      %p30 = por %p28, %p29
      %p31 = scmp.ne.s32.totalorder %s23, %s26
      %p32 = scmp.eq.s32.totalorder %s13, 0
      %p33 = por %p31, %p32
      %p34 = scmp.ne.s32.totalorder %s23, %s26
      %p35 = scmp.eq.s32.totalorder %s18, 1
      %p36 = por %p34, %p35
      %p37 = scmp.ne.s32.totalorder %s26, %s27
      %p38 = scmp.eq.s32.totalorder %s18, 0
      %p39 = por %p37, %p38
      %p40 = scmp.ne.s32.totalorder %s26, %s27
      %p41 = scmp.eq.s32.totalorder %s19, 1
      %p42 = por %p40, %p41
      %p44 = scmp.ne.s32.totalorder %s27, %s43
      %p45 = scmp.eq.s32.totalorder %s19, 0
      %p46 = por %p44, %p45
      %s47 = ssub.s32 %s13, %s20
      %p48 = scmp.eq.s32.totalorder %s47, 0
      %s50 = sadd.s32 %s49, 1
      %s51 = scalar_select %p48, %s49, %s50
      %p54 = pneg %p48
      %p55 = scmp.eq.s32.totalorder %s13, 1
      %p56 = por %p54, %p55
      %p57 = scmp.ne.s32.totalorder %s49, %s52
      %p58 = scmp.eq.s32.totalorder %s13, 0
      %p59 = por %p57, %p58
      %p60 = scmp.ne.s32.totalorder %s49, %s52
      %p61 = scmp.eq.s32.totalorder %s18, 1
      %p62 = por %p60, %p61
      %p63 = scmp.ne.s32.totalorder %s52, %s53
      %p64 = scmp.eq.s32.totalorder %s18, 0
      %p65 = por %p63, %p64
      %p66 = scmp.ne.s32.totalorder %s52, %s53
      %p67 = scmp.eq.s32.totalorder %s19, 1
      %p68 = por %p66, %p67
      %p70 = scmp.ne.s32.totalorder %s53, %s69
      %p71 = scmp.eq.s32.totalorder %s19, 0
      %p72 = por %p70, %p71
      %p73 = scmp.le.s32.totalorder 1, %s13
      %p74 = scmp.lt.s32.totalorder %s13, 3
      %p75 = pnand %p73, %p74
      %p76 = pneg %p75
      // Predicated region
      $region9: #{tpu_custom_call.1} parent=5 // pred_check
        _
      $region10: #{tpu_custom_call.1} parent=5 // pred_check_branch
        %78 = sbr.rel (%p75) target = $region12
      $region11: #{tpu_custom_call.1} parent=5 // pred_region
        %s79 = ssub.s32 %s13, 1
      $region12: #{tpu_custom_call.1} parent=5 // pred_fallthru
        _
      %p80 = scmp.lt.s32.totalorder %s13, 2
      // Predicated region
      $region13: #{tpu_custom_call.1} parent=5 // pred_check
        %p81 = pneg %p80
      $region14: #{tpu_custom_call.1} parent=5 // pred_check_branch
        %83 = sbr.rel (%p81) target = $region16
      $region15: #{tpu_custom_call.1} parent=5 // pred_region
        // Predicated region
        $region17: #{tpu_custom_call.1} parent=15 // pred_check
          %p84 = pneg %p33
        $region18: #{tpu_custom_call.1} parent=15 // pred_check_branch
          %86 = sbr.rel (%p84) target = $region20
        $region19: #{tpu_custom_call.1} parent=15 // pred_region
          %s87 = sand.u32 %s23, 1
          %s88 = scalar_lea.sflag [#allocation3], %s87
          %s89 = sand.u32 %s23, 1
          %s90 = smul.addr %s89, 128
          %s91 = scalar_lea.vmem [#allocation2], %s90
          %s92 = smul.u32 16, %s13
          %s93 = ssub.s32 20, %s92
          %p94 = scmp.lt.s32.totalorder %s93, 16
          %s95 = scalar_select %p94, %s93, 16
          %s96 = smul.u32 128, %s95
          %s98 = ssub.s32 2048, %s96
          %99 = vsyncadd %s88, %s98
          %p100 = scmp.ne.s32.totalorder 0, %s96
          %s101 = smul.addr %s92, 128
          %s102 = scalar_lea.hbm %s0, %s101
          %s103 = smul.u32 8, %s95
          %s104 = sshll.u32 %s91, 4
          %s105 = int_to_ptr.vmem [resolvable:$true] %s104
          %s106 = sshll.u32 %s103, 4
          %110 = dma.hbm_to_vmem [thread:$0]  (%p100), %s102, %s106, %s105, %s88, 128, 128, 8
        $region20: #{tpu_custom_call.1} parent=15 // pred_fallthru
          _
      $region16: #{tpu_custom_call.1} parent=5 // pred_fallthru
        _
      %p111 = scmp.le.s32.totalorder 1, %s13
      %p112 = scmp.lt.s32.totalorder %s13, 3
      %p113 = pnand %p111, %p112
      %p114 = pneg %p113
      // Predicated region
      $region21: #{tpu_custom_call.1} parent=5 // pred_check
        _
      $region22: #{tpu_custom_call.1} parent=5 // pred_check_branch
        %116 = sbr.rel (%p113) target = $region24
      $region23: #{tpu_custom_call.1} parent=5 // pred_region
        %s117 = ssub.s32 %s13, 1
        %s118 = sand.u32 %s26, 1
        %s119 = scalar_lea.sflag [#allocation3], %s118
        %s120 = sand.u32 %s26, 1
        %s121 = smul.addr %s120, 128
        %s122 = scalar_lea.vmem [#allocation2], %s121
        // Predicated region
        $region25: #{tpu_custom_call.1} parent=23 // pred_check
          %p123 = pneg %p39
        $region26: #{tpu_custom_call.1} parent=23 // pred_check_branch
          %125 = sbr.rel (%p123) target = $region28
        $region27: #{tpu_custom_call.1} parent=23 // pred_region
          %126 = dma.done %s119, 2048
        $region28: #{tpu_custom_call.1} parent=23 // pred_fallthru
          _
        %s127 = sand.u32 %s26, 1
        %s128 = scalar_lea.sflag [#allocation3], %s127
        %s129 = sand.u32 %s26, 1
        %s130 = smul.addr %s129, 128
        %s131 = scalar_lea.vmem [#allocation2], %s130
        %p132 = pneg %p39
        %p133 = pneg %p36
        %p134 = pneg %p65
        %p135 = pneg %p62
        %s136 = sand.u32 %s52, 1
        %s137 = scalar_lea.sflag [#allocation4], %s136
        %s138 = sand.u32 %s52, 1
        %s139 = smul.addr %s138, 8
        %s140 = scalar_lea.vmem [#allocation5], %s139
        %s141 = smul.u32 16, %s18
        %s142 = ssub.s32 20, %s141
        %p143 = scmp.lt.s32.totalorder %s142, 16
        %s144 = scalar_select %p143, %s142, 16
        %s145 = smul.u32 128, %s144
        %v146 = vld [vmem:[%s122] sm:$0xff]
        %v147 = vld [vmem:[%s122 + $0x8] sm:$0xff]
        %v148 = vld [vmem:[%s122 + $0x10] sm:$0xff]
        %v149 = vld [vmem:[%s122 + $0x18] sm:$0xff]
        %v150 = vld [vmem:[%s122 + $0x20] sm:$0xff]
        %v151 = vld [vmem:[%s122 + $0x28] sm:$0xff]
        %v152 = vld [vmem:[%s122 + $0x30] sm:$0xff]
        %v153 = vld [vmem:[%s122 + $0x38] sm:$0xff]
        %v154 = vld [vmem:[%s122 + $0x40] sm:$0xff]
        %v155 = vld [vmem:[%s122 + $0x48] sm:$0xff]
        %v156 = vld [vmem:[%s122 + $0x50] sm:$0xff]
        %v157 = vld [vmem:[%s122 + $0x58] sm:$0xff]
        %v158 = vld [vmem:[%s122 + $0x60] sm:$0xff]
        %v159 = vld [vmem:[%s122 + $0x68] sm:$0xff]
        %v160 = vld [vmem:[%s122 + $0x70] sm:$0xff]
        %v161 = vld [vmem:[%s122 + $0x78] sm:$0xff]
        %v162 = vrot.slane %v146, 1
        %v163 = vrot.slane %v147, 1
        %v164 = vrot.slane %v148, 1
        %v165 = vrot.slane %v149, 1
        %v166 = vrot.slane %v150, 1
        %v167 = vrot.slane %v151, 1
        %v168 = vrot.slane %v152, 1
        %v169 = vrot.slane %v153, 1
        %v170 = vrot.slane %v154, 1
        %v171 = vrot.slane %v155, 1
        %v172 = vrot.slane %v156, 1
        %v173 = vrot.slane %v157, 1
        %v174 = vrot.slane %v158, 1
        %v175 = vrot.slane %v159, 1
        %v176 = vrot.slane %v160, 1
        %v177 = vrot.slane %v161, 1
        %v178 = vlaneseq
        %v179 = vshrl.u32 %v178, 7
        %vm180 = vcmp.lt.s32.totalorder %v179, 7
        %v181 = vsel %vm180, %v176, %v177
        %v182 = vsel %vm180, %v175, %v176
        %v183 = vsel %vm180, %v174, %v175
        %v184 = vsel %vm180, %v173, %v174
        %v185 = vsel %vm180, %v172, %v173
        %v186 = vsel %vm180, %v171, %v172
        %v187 = vsel %vm180, %v170, %v171
        %v188 = vsel %vm180, %v169, %v170
        %v189 = vsel %vm180, %v168, %v169
        %v190 = vsel %vm180, %v167, %v168
        %v191 = vsel %vm180, %v166, %v167
        %v192 = vsel %vm180, %v165, %v166
        %v193 = vsel %vm180, %v164, %v165
        %v194 = vsel %vm180, %v163, %v164
        %v195 = vsel %vm180, %v162, %v163
        %v196 = vsel %vm180, %v177, %v162
        %v197 = vsub.f32 %v195, %v146
        %v198 = vsub.f32 %v194, %v147
        %v199 = vsub.f32 %v193, %v148
        %v200 = vsub.f32 %v192, %v149
        %v201 = vsub.f32 %v191, %v150
        %v202 = vsub.f32 %v190, %v151
        %v203 = vsub.f32 %v189, %v152
        %v204 = vsub.f32 %v188, %v153
        %v205 = vsub.f32 %v187, %v154
        %v206 = vsub.f32 %v186, %v155
        %v207 = vsub.f32 %v185, %v156
        %v208 = vsub.f32 %v184, %v157
        %v209 = vsub.f32 %v183, %v158
        %v210 = vsub.f32 %v182, %v159
        %v211 = vsub.f32 %v181, %v160
        %v212 = vsub.f32 %v196, %v161
        %213 = vrot.lane.b32.xlu0 %v146, 127
        %v214 = vpop.permute.xlu0 %213
        %215 = vrot.lane.b32.xlu0 %v147, 127
        %v216 = vpop.permute.xlu0 %215
        %217 = vrot.lane.b32.xlu0 %v148, 127
        %v218 = vpop.permute.xlu0 %217
        %219 = vrot.lane.b32.xlu0 %v149, 127
        %v220 = vpop.permute.xlu0 %219
        %221 = vrot.lane.b32.xlu0 %v150, 127
        %v222 = vpop.permute.xlu0 %221
        %223 = vrot.lane.b32.xlu0 %v151, 127
        %v224 = vpop.permute.xlu0 %223
        %225 = vrot.lane.b32.xlu0 %v152, 127
        %v226 = vpop.permute.xlu0 %225
        %227 = vrot.lane.b32.xlu0 %v153, 127
        %v228 = vpop.permute.xlu0 %227
        %229 = vrot.lane.b32.xlu0 %v154, 127
        %v230 = vpop.permute.xlu0 %229
        %231 = vrot.lane.b32.xlu0 %v155, 127
        %v232 = vpop.permute.xlu0 %231
        %233 = vrot.lane.b32.xlu0 %v156, 127
        %v234 = vpop.permute.xlu0 %233
        %235 = vrot.lane.b32.xlu0 %v157, 127
        %v236 = vpop.permute.xlu0 %235
        %237 = vrot.lane.b32.xlu0 %v158, 127
        %v238 = vpop.permute.xlu0 %237
        %239 = vrot.lane.b32.xlu0 %v159, 127
        %v240 = vpop.permute.xlu0 %239
        %241 = vrot.lane.b32.xlu0 %v160, 127
        %v242 = vpop.permute.xlu0 %241
        %243 = vrot.lane.b32.xlu0 %v161, 127
        %v244 = vpop.permute.xlu0 %243
        %v245 = vsub.f32 %v214, %v146
        %v246 = vsub.f32 %v216, %v147
        %v247 = vsub.f32 %v218, %v148
        %v248 = vsub.f32 %v220, %v149
        %v249 = vsub.f32 %v222, %v150
        %v250 = vsub.f32 %v224, %v151
        %v251 = vsub.f32 %v226, %v152
        %v252 = vsub.f32 %v228, %v153
        %v253 = vsub.f32 %v230, %v154
        %v254 = vsub.f32 %v232, %v155
        %v255 = vsub.f32 %v234, %v156
        %v256 = vsub.f32 %v236, %v157
        %v257 = vsub.f32 %v238, %v158
        %v258 = vsub.f32 %v240, %v159
        %v259 = vsub.f32 %v242, %v160
        %v260 = vsub.f32 %v244, %v161
        %v261 = vadd.s32 %v179, 8
        %v262 = vadd.s32 %v179, 16
        %v263 = vadd.s32 %v179, 24
        %v264 = vadd.s32 %v179, 32
        %v265 = vadd.s32 %v179, 40
        %v266 = vadd.s32 %v179, 48
        %v267 = vadd.s32 %v179, 56
        %v268 = vadd.s32 %v179, 64
        %v269 = vadd.s32 %v179, 72
        %v270 = vadd.s32 %v179, 80
        %v271 = vadd.s32 %v179, 88
        %v272 = vadd.s32 %v179, 96
        %v273 = vadd.s32 %v179, 104
        %v274 = vadd.s32 %v179, 112
        %v275 = vadd.s32 %v179, 120
        %s276 = smul.u32 %s18, 128
        %v277 = vstv %s276
        %v278 = vadd.s32 %v179, %v277
        %v279 = vadd.s32 %v261, %v277
        %v280 = vadd.s32 %v262, %v277
        %v281 = vadd.s32 %v263, %v277
        %v282 = vadd.s32 %v264, %v277
        %v283 = vadd.s32 %v265, %v277
        %v284 = vadd.s32 %v266, %v277
        %v285 = vadd.s32 %v267, %v277
        %v286 = vadd.s32 %v268, %v277
        %v287 = vadd.s32 %v269, %v277
        %v288 = vadd.s32 %v270, %v277
        %v289 = vadd.s32 %v271, %v277
        %v290 = vadd.s32 %v272, %v277
        %v291 = vadd.s32 %v273, %v277
        %v292 = vadd.s32 %v274, %v277
        %v293 = vadd.s32 %v275, %v277
        %v294 = vlaneseq
        %v295 = vand.u32 %v294, 127
        %vm296 = vcmp.lt.s32.totalorder %v278, 160
        %vm297 = vcmp.lt.s32.totalorder %v279, 160
        %vm298 = vcmp.lt.s32.totalorder %v280, 160
        %vm299 = vcmp.lt.s32.totalorder %v281, 160
        %vm300 = vcmp.lt.s32.totalorder %v282, 160
        %vm301 = vcmp.lt.s32.totalorder %v283, 160
        %vm302 = vcmp.lt.s32.totalorder %v284, 160
        %vm303 = vcmp.lt.s32.totalorder %v285, 160
        %vm304 = vcmp.lt.s32.totalorder %v286, 160
        %vm305 = vcmp.lt.s32.totalorder %v287, 160
        %vm306 = vcmp.lt.s32.totalorder %v288, 160
        %vm307 = vcmp.lt.s32.totalorder %v289, 160
        %vm308 = vcmp.lt.s32.totalorder %v290, 160
        %vm309 = vcmp.lt.s32.totalorder %v291, 160
        %vm310 = vcmp.lt.s32.totalorder %v292, 160
        %vm311 = vcmp.lt.s32.totalorder %v293, 160
        %vm312 = vcmp.lt.s32.totalorder %v278, 0
        %v313 = vsub.s32 0, %v278
        %v314 = vsel %vm312, %v313, %v278
        %v315 = vshrl.u32 %v314, 4
        %v316 = vand.u32 %v314, 15
        %v317 = vsub.s32 0, %v316
        %v318 = vsel %vm312, %v317, %v316
        %vm319 = vcmp.lt.s32.totalorder %v279, 0
        %v320 = vsub.s32 0, %v279
        %v321 = vsel %vm319, %v320, %v279
        %v322 = vshrl.u32 %v321, 4
        %v323 = vand.u32 %v321, 15
        %v324 = vsub.s32 0, %v323
        %v325 = vsel %vm319, %v324, %v323
        %vm326 = vcmp.lt.s32.totalorder %v280, 0
        %v327 = vsub.s32 0, %v280
        %v328 = vsel %vm326, %v327, %v280
        %v329 = vshrl.u32 %v328, 4
        %v330 = vand.u32 %v328, 15
        %v331 = vsub.s32 0, %v330
        %v332 = vsel %vm326, %v331, %v330
        %vm333 = vcmp.lt.s32.totalorder %v281, 0
        %v334 = vsub.s32 0, %v281
        %v335 = vsel %vm333, %v334, %v281
        %v336 = vshrl.u32 %v335, 4
        %v337 = vand.u32 %v335, 15
        %v338 = vsub.s32 0, %v337
        %v339 = vsel %vm333, %v338, %v337
        %vm340 = vcmp.lt.s32.totalorder %v282, 0
        %v341 = vsub.s32 0, %v282
        %v342 = vsel %vm340, %v341, %v282
        %v343 = vshrl.u32 %v342, 4
        %v344 = vand.u32 %v342, 15
        %v345 = vsub.s32 0, %v344
        %v346 = vsel %vm340, %v345, %v344
        %vm347 = vcmp.lt.s32.totalorder %v283, 0
        %v348 = vsub.s32 0, %v283
        %v349 = vsel %vm347, %v348, %v283
        %v350 = vshrl.u32 %v349, 4
        %v351 = vand.u32 %v349, 15
        %v352 = vsub.s32 0, %v351
        %v353 = vsel %vm347, %v352, %v351
        %vm354 = vcmp.lt.s32.totalorder %v284, 0
        %v355 = vsub.s32 0, %v284
        %v356 = vsel %vm354, %v355, %v284
        %v357 = vshrl.u32 %v356, 4
        %v358 = vand.u32 %v356, 15
        %v359 = vsub.s32 0, %v358
        %v360 = vsel %vm354, %v359, %v358
        %vm361 = vcmp.lt.s32.totalorder %v285, 0
        %v362 = vsub.s32 0, %v285
        %v363 = vsel %vm361, %v362, %v285
        %v364 = vshrl.u32 %v363, 4
        %v365 = vand.u32 %v363, 15
        %v366 = vsub.s32 0, %v365
        %v367 = vsel %vm361, %v366, %v365
        %vm368 = vcmp.lt.s32.totalorder %v286, 0
        %v369 = vsub.s32 0, %v286
        %v370 = vsel %vm368, %v369, %v286
        %v371 = vshrl.u32 %v370, 4
        %v372 = vand.u32 %v370, 15
        %v373 = vsub.s32 0, %v372
        %v374 = vsel %vm368, %v373, %v372
        %vm375 = vcmp.lt.s32.totalorder %v287, 0
        %v376 = vsub.s32 0, %v287
        %v377 = vsel %vm375, %v376, %v287
        %v378 = vshrl.u32 %v377, 4
        %v379 = vand.u32 %v377, 15
        %v380 = vsub.s32 0, %v379
        %v381 = vsel %vm375, %v380, %v379
        %vm382 = vcmp.lt.s32.totalorder %v288, 0
        %v383 = vsub.s32 0, %v288
        %v384 = vsel %vm382, %v383, %v288
        %v385 = vshrl.u32 %v384, 4
        %v386 = vand.u32 %v384, 15
        %v387 = vsub.s32 0, %v386
        %v388 = vsel %vm382, %v387, %v386
        %vm389 = vcmp.lt.s32.totalorder %v289, 0
        %v390 = vsub.s32 0, %v289
        %v391 = vsel %vm389, %v390, %v289
        %v392 = vshrl.u32 %v391, 4
        %v393 = vand.u32 %v391, 15
        %v394 = vsub.s32 0, %v393
        %v395 = vsel %vm389, %v394, %v393
        %vm396 = vcmp.lt.s32.totalorder %v290, 0
        %v397 = vsub.s32 0, %v290
        %v398 = vsel %vm396, %v397, %v290
        %v399 = vshrl.u32 %v398, 4
        %v400 = vand.u32 %v398, 15
        %v401 = vsub.s32 0, %v400
        %v402 = vsel %vm396, %v401, %v400
        %vm403 = vcmp.lt.s32.totalorder %v291, 0
        %v404 = vsub.s32 0, %v291
        %v405 = vsel %vm403, %v404, %v291
        %v406 = vshrl.u32 %v405, 4
        %v407 = vand.u32 %v405, 15
        %v408 = vsub.s32 0, %v407
        %v409 = vsel %vm403, %v408, %v407
        %vm410 = vcmp.lt.s32.totalorder %v292, 0
        %v411 = vsub.s32 0, %v292
        %v412 = vsel %vm410, %v411, %v292
        %v413 = vshrl.u32 %v412, 4
        %v414 = vand.u32 %v412, 15
        %v415 = vsub.s32 0, %v414
        %v416 = vsel %vm410, %v415, %v414
        %vm417 = vcmp.lt.s32.totalorder %v293, 0
        %v418 = vsub.s32 0, %v293
        %v419 = vsel %vm417, %v418, %v293
        %v420 = vshrl.u32 %v419, 4
        %v421 = vand.u32 %v419, 15
        %v422 = vsub.s32 0, %v421
        %v423 = vsel %vm417, %v422, %v421
        %vm424 = vcmp.ne.s32.totalorder %v318, 0
        %vm425 = vcmp.ne.s32.totalorder %v325, 0
        %vm426 = vcmp.ne.s32.totalorder %v332, 0
        %vm427 = vcmp.ne.s32.totalorder %v339, 0
        %vm428 = vcmp.ne.s32.totalorder %v346, 0
        %vm429 = vcmp.ne.s32.totalorder %v353, 0
        %vm430 = vcmp.ne.s32.totalorder %v360, 0
        %vm431 = vcmp.ne.s32.totalorder %v367, 0
        %vm432 = vcmp.ne.s32.totalorder %v374, 0
        %vm433 = vcmp.ne.s32.totalorder %v381, 0
        %vm434 = vcmp.ne.s32.totalorder %v388, 0
        %vm435 = vcmp.ne.s32.totalorder %v395, 0
        %vm436 = vcmp.ne.s32.totalorder %v402, 0
        %vm437 = vcmp.ne.s32.totalorder %v409, 0
        %vm438 = vcmp.ne.s32.totalorder %v416, 0
        %vm439 = vcmp.ne.s32.totalorder %v423, 0
        %vm440 = vcmp.lt.s32.totalorder %v318, 0
        %vm441 = vcmp.lt.s32.totalorder %v325, 0
        %vm442 = vcmp.lt.s32.totalorder %v332, 0
        %vm443 = vcmp.lt.s32.totalorder %v339, 0
        %vm444 = vcmp.lt.s32.totalorder %v346, 0
        %vm445 = vcmp.lt.s32.totalorder %v353, 0
        %vm446 = vcmp.lt.s32.totalorder %v360, 0
        %vm447 = vcmp.lt.s32.totalorder %v367, 0
        %vm448 = vcmp.lt.s32.totalorder %v374, 0
        %vm449 = vcmp.lt.s32.totalorder %v381, 0
        %vm450 = vcmp.lt.s32.totalorder %v388, 0
        %vm451 = vcmp.lt.s32.totalorder %v395, 0
        %vm452 = vcmp.lt.s32.totalorder %v402, 0
        %vm453 = vcmp.lt.s32.totalorder %v409, 0
        %vm454 = vcmp.lt.s32.totalorder %v416, 0
        %vm455 = vcmp.lt.s32.totalorder %v423, 0
        %vm456 = vmand %vm440, %vm424
        %vm457 = vmand %vm441, %vm425
        %vm458 = vmand %vm442, %vm426
        %vm459 = vmand %vm443, %vm427
        %vm460 = vmand %vm444, %vm428
        %vm461 = vmand %vm445, %vm429
        %vm462 = vmand %vm446, %vm430
        %vm463 = vmand %vm447, %vm431
        %vm464 = vmand %vm448, %vm432
        %vm465 = vmand %vm449, %vm433
        %vm466 = vmand %vm450, %vm434
        %vm467 = vmand %vm451, %vm435
        %vm468 = vmand %vm452, %vm436
        %vm469 = vmand %vm453, %vm437
        %vm470 = vmand %vm454, %vm438
        %vm471 = vmand %vm455, %vm439
        %v472 = vadd.s32 %v318, 16
        %v473 = vadd.s32 %v325, 16
        %v474 = vadd.s32 %v332, 16
        %v475 = vadd.s32 %v339, 16
        %v476 = vadd.s32 %v346, 16
        %v477 = vadd.s32 %v353, 16
        %v478 = vadd.s32 %v360, 16
        %v479 = vadd.s32 %v367, 16
        %v480 = vadd.s32 %v374, 16
        %v481 = vadd.s32 %v381, 16
        %v482 = vadd.s32 %v388, 16
        %v483 = vadd.s32 %v395, 16
        %v484 = vadd.s32 %v402, 16
        %v485 = vadd.s32 %v409, 16
        %v486 = vadd.s32 %v416, 16
        %v487 = vadd.s32 %v423, 16
        %v488 = vsel %vm456, %v472, %v318
        %v489 = vsel %vm457, %v473, %v325
        %v490 = vsel %vm458, %v474, %v332
        %v491 = vsel %vm459, %v475, %v339
        %v492 = vsel %vm460, %v476, %v346
        %v493 = vsel %vm461, %v477, %v353
        %v494 = vsel %vm462, %v478, %v360
        %v495 = vsel %vm463, %v479, %v367
        %v496 = vsel %vm464, %v480, %v374
        %v497 = vsel %vm465, %v481, %v381
        %v498 = vsel %vm466, %v482, %v388
        %v499 = vsel %vm467, %v483, %v395
        %v500 = vsel %vm468, %v484, %v402
        %v501 = vsel %vm469, %v485, %v409
        %v502 = vsel %vm470, %v486, %v416
        %v503 = vsel %vm471, %v487, %v423
        %vm504 = vcmp.ne.s32.totalorder %v488, 15
        %vm505 = vcmp.ne.s32.totalorder %v489, 15
        %vm506 = vcmp.ne.s32.totalorder %v490, 15
        %vm507 = vcmp.ne.s32.totalorder %v491, 15
        %vm508 = vcmp.ne.s32.totalorder %v492, 15
        %vm509 = vcmp.ne.s32.totalorder %v493, 15
        %vm510 = vcmp.ne.s32.totalorder %v494, 15
        %vm511 = vcmp.ne.s32.totalorder %v495, 15
        %vm512 = vcmp.ne.s32.totalorder %v496, 15
        %vm513 = vcmp.ne.s32.totalorder %v497, 15
        %vm514 = vcmp.ne.s32.totalorder %v498, 15
        %vm515 = vcmp.ne.s32.totalorder %v499, 15
        %vm516 = vcmp.ne.s32.totalorder %v500, 15
        %vm517 = vcmp.ne.s32.totalorder %v501, 15
        %vm518 = vcmp.ne.s32.totalorder %v502, 15
        %vm519 = vcmp.ne.s32.totalorder %v503, 15
        %vm520 = vmand %vm296, %vm504
        %vm521 = vmand %vm297, %vm505
        %vm522 = vmand %vm298, %vm506
        %vm523 = vmand %vm299, %vm507
        %vm524 = vmand %vm300, %vm508
        %vm525 = vmand %vm301, %vm509
        %vm526 = vmand %vm302, %vm510
        %vm527 = vmand %vm303, %vm511
        %vm528 = vmand %vm304, %vm512
        %vm529 = vmand %vm305, %vm513
        %vm530 = vmand %vm306, %vm514
        %vm531 = vmand %vm307, %vm515
        %vm532 = vmand %vm308, %vm516
        %vm533 = vmand %vm309, %vm517
        %vm534 = vmand %vm310, %vm518
        %vm535 = vmand %vm311, %vm519
        %v536 = vsel %vm520, %v197, 0.0
        %v537 = vsel %vm521, %v198, 0.0
        %v538 = vsel %vm522, %v199, 0.0
        %v539 = vsel %vm523, %v200, 0.0
        %v540 = vsel %vm524, %v201, 0.0
        %v541 = vsel %vm525, %v202, 0.0
        %v542 = vsel %vm526, %v203, 0.0
        %v543 = vsel %vm527, %v204, 0.0
        %v544 = vsel %vm528, %v205, 0.0
        %v545 = vsel %vm529, %v206, 0.0
        %v546 = vsel %vm530, %v207, 0.0
        %v547 = vsel %vm531, %v208, 0.0
        %v548 = vsel %vm532, %v209, 0.0
        %v549 = vsel %vm533, %v210, 0.0
        %v550 = vsel %vm534, %v211, 0.0
        %v551 = vsel %vm535, %v212, 0.0
        %vm552 = vcmp.ne.s32.totalorder %v295, 127
        %vm553 = vmand %vm296, %vm552
        %vm554 = vmand %vm297, %vm552
        %vm555 = vmand %vm298, %vm552
        %vm556 = vmand %vm299, %vm552
        %vm557 = vmand %vm300, %vm552
        %vm558 = vmand %vm301, %vm552
        %vm559 = vmand %vm302, %vm552
        %vm560 = vmand %vm303, %vm552
        %vm561 = vmand %vm304, %vm552
        %vm562 = vmand %vm305, %vm552
        %vm563 = vmand %vm306, %vm552
        %vm564 = vmand %vm307, %vm552
        %vm565 = vmand %vm308, %vm552
        %vm566 = vmand %vm309, %vm552
        %vm567 = vmand %vm310, %vm552
        %vm568 = vmand %vm311, %vm552
        %v569 = vsel %vm553, %v245, 0.0
        %v570 = vsel %vm554, %v246, 0.0
        %v571 = vsel %vm555, %v247, 0.0
        %v572 = vsel %vm556, %v248, 0.0
        %v573 = vsel %vm557, %v249, 0.0
        %v574 = vsel %vm558, %v250, 0.0
        %v575 = vsel %vm559, %v251, 0.0
        %v576 = vsel %vm560, %v252, 0.0
        %v577 = vsel %vm561, %v253, 0.0
        %v578 = vsel %vm562, %v254, 0.0
        %v579 = vsel %vm563, %v255, 0.0
        %v580 = vsel %vm564, %v256, 0.0
        %v581 = vsel %vm565, %v257, 0.0
        %v582 = vsel %vm566, %v258, 0.0
        %v583 = vsel %vm567, %v259, 0.0
        %v584 = vsel %vm568, %v260, 0.0
        %v585 = vmul.f32 %v536, %v536
        %v586 = vmul.f32 %v537, %v537
        %v587 = vmul.f32 %v538, %v538
        %v588 = vmul.f32 %v539, %v539
        %v589 = vmul.f32 %v540, %v540
        %v590 = vmul.f32 %v541, %v541
        %v591 = vmul.f32 %v542, %v542
        %v592 = vmul.f32 %v543, %v543
        %v593 = vmul.f32 %v544, %v544
        %v594 = vmul.f32 %v545, %v545
        %v595 = vmul.f32 %v546, %v546
        %v596 = vmul.f32 %v547, %v547
        %v597 = vmul.f32 %v548, %v548
        %v598 = vmul.f32 %v549, %v549
        %v599 = vmul.f32 %v550, %v550
        %v600 = vmul.f32 %v551, %v551
        %v601 = vadd.f32 %v585, %v586
        %v602 = vadd.f32 %v601, %v587
        %v603 = vadd.f32 %v602, %v588
        %v604 = vadd.f32 %v603, %v589
        %v605 = vadd.f32 %v604, %v590
        %v606 = vadd.f32 %v605, %v591
        %v607 = vadd.f32 %v606, %v592
        %v608 = vadd.f32 %v607, %v593
        %v609 = vadd.f32 %v608, %v594
        %v610 = vadd.f32 %v609, %v595
        %v611 = vadd.f32 %v610, %v596
        %v612 = vadd.f32 %v611, %v597
        %v613 = vadd.f32 %v612, %v598
        %v614 = vadd.f32 %v613, %v599
        %v615 = vadd.f32 %v614, %v600
        %616 = vadd.xlane.f32.xlu0 %v615
        %v617 = vpop.xlane.xlu0 %616
        %v618 = vrot.slane %v617, 4
        %v619 = vadd.f32 %v617, %v618
        %v620 = vrot.slane %v619, 2
        %v621 = vadd.f32 %v619, %v620
        %v622 = vrot.slane %v621, 1
        %v623 = vadd.f32 %v621, %v622
        %s624 = vtos %v623
        %s625 = smul.f32 %s624, 5.2083335e-05
        %v626 = vmul.f32 %v569, %v569
        %v627 = vmul.f32 %v570, %v570
        %v628 = vmul.f32 %v571, %v571
        %v629 = vmul.f32 %v572, %v572
        %v630 = vmul.f32 %v573, %v573
        %v631 = vmul.f32 %v574, %v574
        %v632 = vmul.f32 %v575, %v575
        %v633 = vmul.f32 %v576, %v576
        %v634 = vmul.f32 %v577, %v577
        %v635 = vmul.f32 %v578, %v578
        %v636 = vmul.f32 %v579, %v579
        %v637 = vmul.f32 %v580, %v580
        %v638 = vmul.f32 %v581, %v581
        %v639 = vmul.f32 %v582, %v582
        %v640 = vmul.f32 %v583, %v583
        %v641 = vmul.f32 %v584, %v584
        %v642 = vadd.f32 %v626, %v627
        %v643 = vadd.f32 %v642, %v628
        %v644 = vadd.f32 %v643, %v629
        %v645 = vadd.f32 %v644, %v630
        %v646 = vadd.f32 %v645, %v631
        %v647 = vadd.f32 %v646, %v632
        %v648 = vadd.f32 %v647, %v633
        %v649 = vadd.f32 %v648, %v634
        %v650 = vadd.f32 %v649, %v635
        %v651 = vadd.f32 %v650, %v636
        %v652 = vadd.f32 %v651, %v637
        %v653 = vadd.f32 %v652, %v638
        %v654 = vadd.f32 %v653, %v639
        %v655 = vadd.f32 %v654, %v640
        %v656 = vadd.f32 %v655, %v641
        %657 = vadd.xlane.f32.xlu0 %v656
        %v658 = vpop.xlane.xlu0 %657
        %v659 = vrot.slane %v658, 4
        %v660 = vadd.f32 %v658, %v659
        %v661 = vrot.slane %v660, 2
        %v662 = vadd.f32 %v660, %v661
        %v663 = vrot.slane %v662, 1
        %v664 = vadd.f32 %v662, %v663
        %s665 = vtos %v664
        %s666 = smul.f32 %s665, 4.92126e-05
        %s667 = sadd.f32 %s625, %s666
        %v668 = vstv %s667
        %669 = vst [vmem:[%s140] sm:$0xff] %v668
        %s670 = sand.u32 %s52, 1
        %s671 = scalar_lea.sflag [#allocation4], %s670
        %s672 = sand.u32 %s52, 1
        %s673 = smul.addr %s672, 8
        %s674 = scalar_lea.vmem [#allocation5], %s673
        // Predicated region
        $region29: #{tpu_custom_call.1} parent=23 // pred_check
          %p675 = pneg %p62
        $region30: #{tpu_custom_call.1} parent=23 // pred_check_branch
          %677 = sbr.rel (%p675) target = $region32
        $region31: #{tpu_custom_call.1} parent=23 // pred_region
          %s679 = ssub.s32 128, 128
          %680 = vsyncadd %s671, %s679
          %s681 = smul.addr %s18, 128
          %s682 = scalar_lea.hbm %s1, %s681
          %s684 = sshll.u32 %s674, 4
          %s685 = int_to_ptr.vmem [resolvable:$true] %s684
          %687 = dma.vmem_to_hbm [thread:$0]  %s685, 128, %s682, %s671
        $region32: #{tpu_custom_call.1} parent=23 // pred_fallthru
          _
      $region24: #{tpu_custom_call.1} parent=5 // pred_fallthru
        _
      %p688 = scmp.le.s32.totalorder 2, %s13
      // Predicated region
      $region33: #{tpu_custom_call.1} parent=5 // pred_check
        %p689 = pneg %p688
      $region34: #{tpu_custom_call.1} parent=5 // pred_check_branch
        %691 = sbr.rel (%p689) target = $region36
      $region35: #{tpu_custom_call.1} parent=5 // pred_region
        %s692 = ssub.s32 %s13, 2
        // Predicated region
        $region37: #{tpu_custom_call.1} parent=35 // pred_check
          %p693 = pneg %p68
        $region38: #{tpu_custom_call.1} parent=35 // pred_check_branch
          %695 = sbr.rel (%p693) target = $region40
        $region39: #{tpu_custom_call.1} parent=35 // pred_region
          %s696 = sand.u32 %s53, 1
          %s697 = scalar_lea.sflag [#allocation4], %s696
          %s698 = sand.u32 %s53, 1
          %s699 = smul.addr %s698, 8
          %s700 = scalar_lea.vmem [#allocation5], %s699
          %701 = dma.done %s697, 128
        $region40: #{tpu_custom_call.1} parent=35 // pred_fallthru
          _
      $region36: #{tpu_custom_call.1} parent=5 // pred_fallthru
        _
    $region6: #{tpu_custom_call.1} parent=1 // loop_footer
      %s17 = sadd.s32 1, %s13
    $region7: #{tpu_custom_call.1} parent=1 // loop_footer_branch
      %12 = sbr.rel target = $region3
    $region8: #{tpu_custom_call.1} parent=1 // loop_exit
      _
    %702 = vsyncpa [#allocation3], 1
    %s703 = scalar_lea.sflag [#allocation3], 1
    %704 = vsyncpa %s703, 1
    %705 = vsyncpa [#allocation4], 1
    %s706 = scalar_lea.sflag [#allocation4], 1
    %707 = vsyncpa %s706, 1

</llo_original>
